<compile_context>
chip_gen: v5e
topology: v5e:2x2
jax: 0.10.0
libtpu: 0.0.40
codegen_flags: <defaults>
</compile_context>

<pallas_src>
import jax
import jax.numpy as jnp
from jax.experimental import pallas as pl
from jax.experimental.pallas import tpu as pltpu


IN_FEATURES = 4    # int(np.prod(env.observation_space.shape)) for CartPole-v0
HIDDEN = 64
N_ACTIONS = 2      # env.action_space.n for CartPole-v0
OUT_PAD = 128      # lane-dense padded output width
TARGET_TB = 1024   # batch tile (rows); multiple of 8, VMEM-safe on all gens


def _round_up(x, m):
    return ((x + m - 1) // m) * m


def _mlp_kernel(x_ref, w1_ref, b1_ref, w2_ref, b2_ref, o_ref):
    # x_ref:  (TB, IN_FEATURES)
    # w1_ref: (IN_FEATURES, HIDDEN), b1_ref: (1, HIDDEN)
    # w2_ref: (HIDDEN, OUT_PAD),     b2_ref: (1, OUT_PAD)
    # o_ref:  (TB, OUT_PAD)
    x = x_ref[...]
    w1 = w1_ref[...]

    # Layer 1: K=4 is <2% MXU utilization -> 4 broadcast FMAs on the VPU.
    h = jnp.broadcast_to(b1_ref[...], (x.shape[0], HIDDEN))
    for k in range(IN_FEATURES):  # tiny fixed trip-count, fully unrolled
        h = h + x[:, k:k + 1] * w1[k:k + 1, :]
    h = jnp.tanh(h)  # EUP

    # Layer 2 on the MXU; 128-wide lane-dense output tile (unmasked stores).
    q = jnp.dot(h, w2_ref[...], preferred_element_type=jnp.float32) + b2_ref[...]
    o_ref[...] = q.astype(o_ref.dtype)


def network_forward(x, w1, b1, w2, b2):
    """Forward pass of Network. x: [B, IN_FEATURES] float32 -> [B, N_ACTIONS]."""
    B = x.shape[0]

    # Pick a batch tile: multiple of 8 (sublane), capped at TARGET_TB.
    TB = min(TARGET_TB, _round_up(B, 8))
    B_pad = _round_up(B, TB)
    if B_pad != B:
        x = jnp.pad(x, ((0, B_pad - B), (0, 0)))

    # Biases as (1, F) tiles; pad layer-2 params to a lane-dense 128 columns.
    b1_2d = b1.reshape(1, HIDDEN)
    w2_p = jnp.pad(w2, ((0, 0), (0, OUT_PAD - N_ACTIONS)))
    b2_p = jnp.pad(b2, (0, OUT_PAD - N_ACTIONS)).reshape(1, OUT_PAD)

    grid = (B_pad // TB,)

    flops = 2 * B_pad * (IN_FEATURES * HIDDEN + HIDDEN * OUT_PAD)
    bytes_accessed = 4 * (
        B_pad * IN_FEATURES            # x
        + IN_FEATURES * HIDDEN + HIDDEN  # w1, b1
        + HIDDEN * OUT_PAD + OUT_PAD     # w2_p, b2_p
        + B_pad * OUT_PAD                # out
    )

    out = pl.pallas_call(
        _mlp_kernel,
        out_shape=jax.ShapeDtypeStruct((B_pad, OUT_PAD), jnp.float32),
        grid=grid,
        in_specs=[
            # Batch-tiled activations: pipelined across the grid.
            pl.BlockSpec((TB, IN_FEATURES), lambda i: (i, 0)),
            # Weights / biases: constant block -> stay VMEM-resident.
            pl.BlockSpec((IN_FEATURES, HIDDEN), lambda i: (0, 0)),
            pl.BlockSpec((1, HIDDEN), lambda i: (0, 0)),
            pl.BlockSpec((HIDDEN, OUT_PAD), lambda i: (0, 0)),
            pl.BlockSpec((1, OUT_PAD), lambda i: (0, 0)),
        ],
        out_specs=pl.BlockSpec((TB, OUT_PAD), lambda i: (i, 0)),
        compiler_params=pltpu.CompilerParams(
            dimension_semantics=("parallel",),  # shards across v7x's 2 TCs
        ),
        cost_estimate=pl.CostEstimate(
            flops=flops,
            transcendentals=B_pad * HIDDEN,
            bytes_accessed=bytes_accessed,
        ),
    )(x, w1, b1_2d, w2_p, b2_p)

    # Drop batch padding and the zero-padded action columns.
    return out[:B, :N_ACTIONS]


def init_params(key):
    """Deterministic init matching the PyTorch module's parameter shapes.

    PyTorch nn.Linear uses U(-1/sqrt(fan_in), 1/sqrt(fan_in)); we mirror that.
    Weights are stored transposed ([in, out]) relative to PyTorch's [out, in].
    """
    k1, k2, k3, k4 = jax.random.split(key, 4)
    bound1 = 1.0 / jnp.sqrt(IN_FEATURES)
    bound2 = 1.0 / jnp.sqrt(HIDDEN)
    w1 = jax.random.uniform(k1, (IN_FEATURES, HIDDEN), jnp.float32, -bound1, bound1)
    b1 = jax.random.uniform(k2, (HIDDEN,), jnp.float32, -bound1, bound1)
    w2 = jax.random.uniform(k3, (HIDDEN, N_ACTIONS), jnp.float32, -bound2, bound2)
    b2 = jax.random.uniform(k4, (N_ACTIONS,), jnp.float32, -bound2, bound2)
    return w1, b1, w2, b2


if __name__ == "__main__":
    key = jax.random.PRNGKey(0)
    pkey, xkey = jax.random.split(key)

    w1, b1, w2, b2 = init_params(pkey)

    # Small batch of CartPole observations (obs dim = 4).
    x = jax.random.normal(xkey, (2, IN_FEATURES), dtype=jnp.float32)

    q_values = network_forward(x, w1, b1, w2, b2)
    q_values = jax.block_until_ready(q_values)

    # Reference check against plain JAX.
    ref = jnp.tanh(x @ w1 + b1) @ w2 + b2
    assert q_values.shape == (2, N_ACTIONS)
    assert jnp.allclose(q_values, ref, atol=1e-5, rtol=1e-5)

    # Also exercise a batch that spans multiple grid tiles and ragged padding.
    xb = jax.random.normal(jax.random.PRNGKey(1), (2050, IN_FEATURES), jnp.float32)
    qb = jax.block_until_ready(network_forward(xb, w1, b1, w2, b2))
    refb = jnp.tanh(xb @ w1 + b1) @ w2 + b2
    assert qb.shape == (2050, N_ACTIONS)
    assert jnp.allclose(qb, refb, atol=1e-5, rtol=1e-5)

    # `act` equivalent (argmax over q-values) — plain JAX glue, not hot path.
    _actions = jnp.argmax(q_values, axis=1)

    print("KERNEL_OK")
</pallas_src>

<mosaic_0001>
module attributes {stable_mosaic.version = 11 : i64} {
  func.func @_mlp_kernel(%arg0: i32, %arg1: memref<8x4xf32, #tpu.memory_space<vmem>>, %arg2: memref<4x64xf32, #tpu.memory_space<vmem>>, %arg3: memref<1x64xf32, #tpu.memory_space<vmem>>, %arg4: memref<64x128xf32, #tpu.memory_space<vmem>>, %arg5: memref<1x128xf32, #tpu.memory_space<vmem>>, %arg6: memref<8x128xf32, #tpu.memory_space<vmem>>) attributes {dimension_semantics = [#tpu.dimension_semantics<parallel>], iteration_bounds = array<i64: 1>, scalar_prefetch = 0 : i64, scratch_operands = 0 : i64, tpu.core_type = #tpu.core_type<tc>, window_params = [{transform_indices = @transform_0, window_bounds = array<i64: 8, 4>}, {pipeline_mode = #tpu.pipeline_mode<synchronous>, transform_indices = @transform_1, window_bounds = array<i64: 4, 64>}, {pipeline_mode = #tpu.pipeline_mode<synchronous>, transform_indices = @transform_2, window_bounds = array<i64: 1, 64>}, {pipeline_mode = #tpu.pipeline_mode<synchronous>, transform_indices = @transform_3, window_bounds = array<i64: 64, 128>}, {pipeline_mode = #tpu.pipeline_mode<synchronous>, transform_indices = @transform_4, window_bounds = array<i64: 1, 128>}, {transform_indices = @transform_5, window_bounds = array<i64: 8, 128>}]} {
    %c0 = arith.constant 0 : index
    %c0_0 = arith.constant 0 : index
    %0 = vector.load %arg1[%c0, %c0_0] : memref<8x4xf32, #tpu.memory_space<vmem>>, vector<8x4xf32>
    %c0_1 = arith.constant 0 : index
    %c0_2 = arith.constant 0 : index
    %1 = vector.load %arg2[%c0_1, %c0_2] : memref<4x64xf32, #tpu.memory_space<vmem>>, vector<4x64xf32>
    %c0_3 = arith.constant 0 : index
    %c0_4 = arith.constant 0 : index
    %2 = vector.load %arg3[%c0_3, %c0_4] : memref<1x64xf32, #tpu.memory_space<vmem>>, vector<1x64xf32>
    %3 = vector.shape_cast %2 : vector<1x64xf32> to vector<1x64xf32>
    %4 = vector.broadcast %3 : vector<1x64xf32> to vector<8x64xf32>
    %5 = vector.extract_strided_slice %0 {offsets = [0, 0], sizes = [8, 1], strides = [1, 1]} : vector<8x4xf32> to vector<8x1xf32>
    %6 = vector.extract_strided_slice %1 {offsets = [0, 0], sizes = [1, 64], strides = [1, 1]} : vector<4x64xf32> to vector<1x64xf32>
    %7 = vector.broadcast %5 : vector<8x1xf32> to vector<8x64xf32>
    %8 = vector.broadcast %6 : vector<1x64xf32> to vector<8x64xf32>
    %9 = arith.mulf %7, %8 : vector<8x64xf32>
    %10 = arith.addf %4, %9 : vector<8x64xf32>
    %11 = vector.extract_strided_slice %0 {offsets = [0, 1], sizes = [8, 1], strides = [1, 1]} : vector<8x4xf32> to vector<8x1xf32>
    %12 = vector.extract_strided_slice %1 {offsets = [1, 0], sizes = [1, 64], strides = [1, 1]} : vector<4x64xf32> to vector<1x64xf32>
    %13 = vector.broadcast %11 : vector<8x1xf32> to vector<8x64xf32>
    %14 = vector.broadcast %12 : vector<1x64xf32> to vector<8x64xf32>
    %15 = arith.mulf %13, %14 : vector<8x64xf32>
    %16 = arith.addf %10, %15 : vector<8x64xf32>
    %17 = vector.extract_strided_slice %0 {offsets = [0, 2], sizes = [8, 1], strides = [1, 1]} : vector<8x4xf32> to vector<8x1xf32>
    %18 = vector.extract_strided_slice %1 {offsets = [2, 0], sizes = [1, 64], strides = [1, 1]} : vector<4x64xf32> to vector<1x64xf32>
    %19 = vector.broadcast %17 : vector<8x1xf32> to vector<8x64xf32>
    %20 = vector.broadcast %18 : vector<1x64xf32> to vector<8x64xf32>
    %21 = arith.mulf %19, %20 : vector<8x64xf32>
    %22 = arith.addf %16, %21 : vector<8x64xf32>
    %23 = vector.extract_strided_slice %0 {offsets = [0, 3], sizes = [8, 1], strides = [1, 1]} : vector<8x4xf32> to vector<8x1xf32>
    %24 = vector.extract_strided_slice %1 {offsets = [3, 0], sizes = [1, 64], strides = [1, 1]} : vector<4x64xf32> to vector<1x64xf32>
    %25 = vector.broadcast %23 : vector<8x1xf32> to vector<8x64xf32>
    %26 = vector.broadcast %24 : vector<1x64xf32> to vector<8x64xf32>
    %27 = arith.mulf %25, %26 : vector<8x64xf32>
    %28 = arith.addf %22, %27 : vector<8x64xf32>
    %29 = math.tanh %28 : vector<8x64xf32>
    %c0_5 = arith.constant 0 : index
    %c0_6 = arith.constant 0 : index
    %30 = vector.load %arg4[%c0_5, %c0_6] : memref<64x128xf32, #tpu.memory_space<vmem>>, vector<64x128xf32>
    %cst = arith.constant dense<0.000000e+00> : vector<8x128xf32>
    %31 = tpu.matmul %29, %30, %cst {dimension_numbers = #tpu.dot_dimension_numbers<[1], [0], [0], [1], [0, 0, 1, 1], [], []>} : vector<8x64xf32>, vector<64x128xf32>, vector<8x128xf32> -> vector<8x128xf32>
    %c0_7 = arith.constant 0 : index
    %c0_8 = arith.constant 0 : index
    %32 = vector.load %arg5[%c0_7, %c0_8] : memref<1x128xf32, #tpu.memory_space<vmem>>, vector<1x128xf32>
    %33 = vector.broadcast %32 : vector<1x128xf32> to vector<8x128xf32>
    %34 = arith.addf %31, %33 : vector<8x128xf32>
    %c0_9 = arith.constant 0 : index
    %c0_10 = arith.constant 0 : index
    %35 = vector.load %arg6[%c0_9, %c0_10] : memref<8x128xf32, #tpu.memory_space<vmem>>, vector<8x128xf32>
    tpu.vector_store %arg6[%c0_9, %c0_10], %34 {strides = array<i32>} : memref<8x128xf32, #tpu.memory_space<vmem>>, vector<8x128xf32>,
    return
  }
  func.func @transform_0(%arg0: i32) -> (i32, i32) {
    %c0_i32 = arith.constant 0 : i32
    %c0_i32_0 = arith.constant 0 : i32
    return %arg0, %c0_i32 : i32, i32
  }
  func.func @transform_1(%arg0: i32) -> (i32, i32) {
    %c0_i32 = arith.constant 0 : i32
    %c0_i32_0 = arith.constant 0 : i32
    %c0_i32_1 = arith.constant 0 : i32
    return %c0_i32, %c0_i32_0 : i32, i32
  }
  func.func @transform_2(%arg0: i32) -> (i32, i32) {
    %c0_i32 = arith.constant 0 : i32
    %c0_i32_0 = arith.constant 0 : i32
    %c0_i32_1 = arith.constant 0 : i32
    return %c0_i32, %c0_i32_0 : i32, i32
  }
  func.func @transform_3(%arg0: i32) -> (i32, i32) {
    %c0_i32 = arith.constant 0 : i32
    %c0_i32_0 = arith.constant 0 : i32
    %c0_i32_1 = arith.constant 0 : i32
    return %c0_i32, %c0_i32_0 : i32, i32
  }
  func.func @transform_4(%arg0: i32) -> (i32, i32) {
    %c0_i32 = arith.constant 0 : i32
    %c0_i32_0 = arith.constant 0 : i32
    %c0_i32_1 = arith.constant 0 : i32
    return %c0_i32, %c0_i32_0 : i32, i32
  }
  func.func @transform_5(%arg0: i32) -> (i32, i32) {
    %c0_i32 = arith.constant 0 : i32
    %c0_i32_0 = arith.constant 0 : i32
    return %arg0, %c0_i32 : i32, i32
  }
}

</mosaic_0001>

<llo_original>
// kernel: tpu_custom_call.1
$region0: #{tpu_custom_call.1}
  #allocation0 [shape = 'u32[]', space=smem, size = 0x4, offset = 0x4, fixed_abs, tag = 'smem constant byte address 0x4 - core index']
  #allocation1 [shape = 'u32[72,128]{1,0:T(1,128)}', space=vmem, size = 0x9000, scoped, tag = 'internal scratch']
  %s0 = inlined_call_operand.vmem [shape: f32[8,4], index: 0, kind: input, shape index: {}]
  %s1 = inlined_call_operand.vmem [shape: f32[4,64], index: 1, kind: input, shape index: {}]
  %s2 = inlined_call_operand.vmem [shape: f32[1,64], index: 2, kind: input, shape index: {}]
  %s3 = inlined_call_operand.hbm [shape: f32[64,128], index: 3, kind: input, shape index: {}]
  %s4 = inlined_call_operand.vmem [shape: f32[1,128], index: 4, kind: input, shape index: {}]
  %s5 = inlined_call_operand.hbm [shape: f32[8,128], index: 5, kind: output, shape index: {}]
  %s6 = sld [smem:[#allocation0]]
  $region34: #{tpu_custom_call.1} parent=0
    _
  %s8 = ssub.s32 1, %s6
  %s9 = scalar_select 0, %s8, %s6
  $region1: #{tpu_custom_call.1} parent=0
    #allocation2 [shape = 'u8[32768]{0}', space=vmem, size = 0x8000, scoped, tag = 'input window, operand 3, single buffered']
    #allocation3 [shape = 's32[1]{0}', space=sflag, size = 0x4, scoped, tag = 'scoped memory for tpu_custom_call.1']
    #allocation4 [shape = 's32[1]{0}', space=sflag, size = 0x4, scoped, tag = 'scoped memory for tpu_custom_call.1']
    #allocation5 [shape = 'u8[4096]{0}', space=vmem, size = 0x1000, scoped, tag = 'output window, operand 0, single buffered']
    %10 = vsyncpa [#allocation3], 0
    %11 = vsyncpa [#allocation4], 0
    // Predicated region
    $region2: #{tpu_custom_call.1} parent=1 // pred_check
      _
    $region3: #{tpu_custom_call.1} parent=1 // pred_check_branch
      %13 = sbr.rel (0) target = $region5
    $region4: #{tpu_custom_call.1} parent=1 // pred_region
      _
    $region5: #{tpu_custom_call.1} parent=1 // pred_fallthru
      _
    // Predicated region
    $region6: #{tpu_custom_call.1} parent=1 // pred_check
      _
    $region7: #{tpu_custom_call.1} parent=1 // pred_check_branch
      %15 = sbr.rel (0) target = $region9
    $region8: #{tpu_custom_call.1} parent=1 // pred_region
      _
    $region9: #{tpu_custom_call.1} parent=1 // pred_fallthru
      _
    // Predicated region
    $region10: #{tpu_custom_call.1} parent=1 // pred_check
      _
    $region11: #{tpu_custom_call.1} parent=1 // pred_check_branch
      %17 = sbr.rel (0) target = $region13
    $region12: #{tpu_custom_call.1} parent=1 // pred_region
      _
    $region13: #{tpu_custom_call.1} parent=1 // pred_fallthru
      _
    // Predicated region
    $region14: #{tpu_custom_call.1} parent=1 // pred_check
      _
    $region15: #{tpu_custom_call.1} parent=1 // pred_check_branch
      %19 = sbr.rel (0) target = $region17
    $region16: #{tpu_custom_call.1} parent=1 // pred_region
      %21 = vsyncadd [#allocation3], 0
      %s22 = sshll.u32 %s3, 4
      %s23 = int_to_ptr.hbm [resolvable:$true] %s22
      %s24 = sshll.u32 [#allocation2], 4
      %s25 = int_to_ptr.vmem [resolvable:$true] %s24
      %30 = dma.hbm_to_vmem [thread:$0]  %s23, 1024, %s25, [#allocation3], 128, 128, 8
    $region17: #{tpu_custom_call.1} parent=1 // pred_fallthru
      _
    // Predicated region
    $region18: #{tpu_custom_call.1} parent=1 // pred_check
      _
    $region19: #{tpu_custom_call.1} parent=1 // pred_check_branch
      %32 = sbr.rel (0) target = $region21
    $region20: #{tpu_custom_call.1} parent=1 // pred_region
      _
    $region21: #{tpu_custom_call.1} parent=1 // pred_fallthru
      _
    // Predicated region
    $region22: #{tpu_custom_call.1} parent=1 // pred_check
      _
    $region23: #{tpu_custom_call.1} parent=1 // pred_check_branch
      %34 = sbr.rel (0) target = $region25
    $region24: #{tpu_custom_call.1} parent=1 // pred_region
      %36 = dma.done [#allocation3], 1024
    $region25: #{tpu_custom_call.1} parent=1 // pred_fallthru
      _
    %v37 = vld [vmem:[%s0] sm:$0xff]
    %v38 = vld [vmem:[%s1] sm:$0xf]
    %v39 = vld [vmem:[%s2] sm:$0x1]
    %v41 = vperm.slane %v39, 0
    %44 = vset.pattern.permute.xlu0 0
    %45 = vperm.xlu0 %44, %v37
    %v46 = vpop.permute.xlu0 %45
    %v48 = vperm.slane %v38, 0
    %v49 = vmul.f32 %v46, %v48
    %v50 = vadd.f32 %v41, %v49
    %51 = vset.pattern.permute.xlu0 1
    %52 = vperm.xlu0 %51, %v37
    %v53 = vpop.permute.xlu0 %52
    %v55 = vperm.slane %v38, 1
    %v56 = vmul.f32 %v53, %v55
    %v57 = vadd.f32 %v50, %v56
    %58 = vset.pattern.permute.xlu0 2
    %59 = vperm.xlu0 %58, %v37
    %v60 = vpop.permute.xlu0 %59
    %v62 = vperm.slane %v38, 2
    %v63 = vmul.f32 %v60, %v62
    %v64 = vadd.f32 %v57, %v63
    %65 = vset.pattern.permute.xlu0 3
    %66 = vperm.xlu0 %65, %v37
    %v67 = vpop.permute.xlu0 %66
    %v69 = vperm.slane %v38, 3
    %v70 = vmul.f32 %v67, %v69
    %v71 = vadd.f32 %v64, %v70
    %v72 = vtanh.pop %v71
    %v73 = vld [vmem:[#allocation2] sm:$0xff]
    %v74 = vld [vmem:[#allocation2 + $0x8] sm:$0xff]
    %v75 = vld [vmem:[#allocation2 + $0x10] sm:$0xff]
    %v76 = vld [vmem:[#allocation2 + $0x18] sm:$0xff]
    %v77 = vld [vmem:[#allocation2 + $0x20] sm:$0xff]
    %v78 = vld [vmem:[#allocation2 + $0x28] sm:$0xff]
    %v79 = vld [vmem:[#allocation2 + $0x30] sm:$0xff]
    %v80 = vld [vmem:[#allocation2 + $0x38] sm:$0xff]
    %v81 = vld [vmem:[%s4] sm:$0x1]
    %v83 = vperm.slane %v81, 0
    %vm85 = vcmask 523264
    %v87 = vsel %vm85, %v72, 0
    %89 = vmatpush.msra.mxu0 0.0
    %90 = vmatpush.msra.mxu0 0.0
    %91 = vmatpush.msra.mxu0 0.0
    %92 = vmatpush.msra.mxu0 0.0
    %93 = vmatpush.msra.mxu0 0.0
    %94 = vmatpush.msra.mxu0 0.0
    %95 = vmatpush.msra.mxu0 0.0
    %96 = vmatpush.msra.mxu0 0.0
    %97 = vmatpush.msra.mxu0 %v80
    %98 = vmatpush.msra.mxu0 %v79
    %99 = vmatpush.msra.mxu0 %v78
    %100 = vmatpush.msra.mxu0 %v77
    %101 = vmatpush.msra.mxu0 %v76
    %102 = vmatpush.msra.mxu0 %v75
    %103 = vmatpush.msra.mxu0 %v74
    %104 = vmatpush.msra.mxu0 %v73
    %105 = vmatmul.f32.gmra.mxu0 %v87
    %v106 = vpop.f32.mrf.mxu0
    %v107 = vadd.f32 %v83, %v106
    %108 = vdwg.mxu0
    %109 = vst [vmem:[#allocation5] sm:$0xff] %v107
    // Predicated region
    $region26: #{tpu_custom_call.1} parent=1 // pred_check
      _
    $region27: #{tpu_custom_call.1} parent=1 // pred_check_branch
      %111 = sbr.rel (0) target = $region29
    $region28: #{tpu_custom_call.1} parent=1 // pred_region
      %113 = vsyncadd [#allocation4], 0
      %s115 = sshll.u32 [#allocation5], 4
      %s116 = int_to_ptr.vmem [resolvable:$true] %s115
      %s117 = sshll.u32 %s5, 4
      %s118 = int_to_ptr.hbm [resolvable:$true] %s117
      %120 = dma.vmem_to_hbm [thread:$0]  %s116, 128, %s118, [#allocation4]
    $region29: #{tpu_custom_call.1} parent=1 // pred_fallthru
      _
    // Predicated region
    $region30: #{tpu_custom_call.1} parent=1 // pred_check
      _
    $region31: #{tpu_custom_call.1} parent=1 // pred_check_branch
      %122 = sbr.rel (0) target = $region33
    $region32: #{tpu_custom_call.1} parent=1 // pred_region
      %124 = dma.done [#allocation4], 128
    $region33: #{tpu_custom_call.1} parent=1 // pred_fallthru
      _
    %125 = vsyncpa [#allocation3], 1
    %126 = vsyncpa [#allocation4], 1

</llo_original>
